<compile_context>
chip_gen: v6e
topology: v6e:2x2x1
jax: 0.10.0
libtpu: 0.0.40
codegen_flags: <defaults>
</compile_context>

<pallas_src>
import functools

import jax
import jax.numpy as jnp
from jax.experimental import pallas as pl
from jax.experimental.pallas import tpu as pltpu


# -----------------------------------------------------------------------------
# One-time parameter prep (hoisted out of the per-call path).
# -----------------------------------------------------------------------------
def prepare_se_params(w1, b1, w2, b2):
    """w1: (Cmid, C), b1: (Cmid,), w2: (2C, Cmid), b2: (2C,) -- squeezed 1x1 convs.

    fc2 even rows = 'mean' gate, odd rows = 'std'; fuse them into one matmul so
    output lanes [0:C) are the mean gate and [C:2C) the std.
    """
    w1_t = jnp.asarray(w1).T                                         # (C, Cmid)
    b1_row = jnp.asarray(b1).reshape(1, -1)                          # (1, Cmid)
    w2 = jnp.asarray(w2)
    b2 = jnp.asarray(b2)
    w2_fused_t = jnp.concatenate([w2[0::2], w2[1::2]], axis=0).T     # (Cmid, 2C)
    b2_fused = jnp.concatenate([b2[0::2], b2[1::2]]).reshape(1, -1)  # (1, 2C)
    return w1_t, b1_row, w2_fused_t, b2_fused


# -----------------------------------------------------------------------------
# Kernels
# -----------------------------------------------------------------------------
def _se_fused_kernel(x_ref, w1_ref, b1_ref, w2_ref, b2_ref, out_ref, gates_ref):
    """Single-pass: whole (Nb, C, HW) slab per grid step."""
    x = x_ref[...]
    C = x.shape[1]

    # Global average pool -> row layout (Nb, C): channels on lanes.
    m = jnp.mean(x.astype(jnp.float32), axis=-1)                     # (Nb, C)

    # fc1 + ReLU, then fused fc2 + sigmoid (all row layout, f32 accumulate).
    h = jnp.dot(m, w1_ref[...], preferred_element_type=jnp.float32) + b1_ref[...]
    h = jnp.maximum(h, 0.0)                                          # (Nb, Cmid)
    s = jnp.dot(h, w2_ref[...], preferred_element_type=jnp.float32) + b2_ref[...]
    s = jax.nn.sigmoid(s)                                            # (Nb, 2C)

    # Lane-dense gate slab: one unmasked store.
    gates_ref[...] = s[:, None, :]

    # Rescale input by the mean gate (static lane slice, one small relayout).
    gm = s[:, :C]                                                    # (Nb, C)
    out_ref[...] = (x.astype(jnp.float32) * gm[:, :, None]).astype(out_ref.dtype)


def _se_gate_kernel(x_ref, w1_ref, b1_ref, w2_ref, b2_ref, gates_ref, acc_ref,
                    *, inv_hw):
    """Tiled pass 1: accumulate per-channel sums over HW tiles; FC on last tile."""
    t = pl.program_id(1)

    @pl.when(t == 0)
    def _():
        acc_ref[...] = jnp.zeros_like(acc_ref)

    acc_ref[...] += jnp.sum(x_ref[...].astype(jnp.float32), axis=-1)  # (Nb, C)

    @pl.when(t == pl.num_programs(1) - 1)
    def _():
        m = acc_ref[...] * inv_hw
        h = jnp.dot(m, w1_ref[...], preferred_element_type=jnp.float32) + b1_ref[...]
        h = jnp.maximum(h, 0.0)
        s = jnp.dot(h, w2_ref[...], preferred_element_type=jnp.float32) + b2_ref[...]
        s = jax.nn.sigmoid(s)
        gates_ref[...] = s[:, None, :]


def _se_rescale_kernel(x_ref, g_ref, out_ref):
    """Tiled pass 2: out = x * mean_gate, fully parallel over (batch, HW tiles)."""
    out_ref[...] = (x_ref[...].astype(jnp.float32) * g_ref[...]).astype(out_ref.dtype)


# -----------------------------------------------------------------------------
# Planning helpers (all trace-time / static-shape Python)
# -----------------------------------------------------------------------------
def _vmem_capacity_bytes():
    try:
        return int(pltpu.get_tpu_info().vmem_capacity_bytes)
    except Exception:
        return 64 * 1024 * 1024   # assume the tightest generation (v7x)


def _round_up(x, m):
    return (x + m - 1) // m * m


def _plan_hw_tile(C, HW, itemsize, block_budget):
    """Pick an HW tile (multiple of 128) for the tiled path; prefer a divisor."""
    max_thw = max(128, (block_budget // max(1, C * itemsize)) // 128 * 128)
    t = min(max_thw, max(128, HW // 128 * 128))
    while t >= 128:
        if HW % t == 0:
            return t, HW                      # no padding needed
        t -= 128
    # TODO(synk): no multiple-of-128 divisor fits -> pad HW (extra copy).
    thw = min(max_thw, _round_up(HW, 128))
    return thw, _round_up(HW, thw)


# -----------------------------------------------------------------------------
# Forward wrapper
# -----------------------------------------------------------------------------
@functools.partial(jax.jit, donate_argnums=(0,),
                   static_argnames=("block_budget_bytes",))
def se_module_forward(x_nchw, w1_t, b1_row, w2_fused_t, b2_fused,
                      *, block_budget_bytes=None):
    """x_nchw: (N, C, H, W). Returns (x*mean, (mean, std)) like eval mode.

    x_nchw is DONATED: the rescaled output reuses its HBM buffer in place.
    """
    N, C, H, W = x_nchw.shape
    HW = H * W
    Cmid = w1_t.shape[1]
    C2 = w2_fused_t.shape[1]
    itemsize = x_nchw.dtype.itemsize
    x = x_nchw.reshape(N, C, HW)              # pure bitcast

    # ---- per-generation VMEM planning --------------------------------------
    vmem_cap = _vmem_capacity_bytes()
    vmem_limit = min(int(0.75 * vmem_cap), 96 * 1024 * 1024)
    weight_bytes = sum(int(a.size) * a.dtype.itemsize
                       for a in (w1_t, b1_row, w2_fused_t, b2_fused))
    if block_budget_bytes is None:
        # in + out x blocks are each double buffered -> ~4x block footprint.
        block_budget = (vmem_limit - 2 * weight_bytes - (2 << 20)) // 4
        block_budget = max(128 * 1024, min(block_budget, 16 * 1024 * 1024))
    else:
        block_budget = int(block_budget_bytes)

    slab = C * HW * itemsize                  # one batch element's (C, HW) slab

    if slab <= block_budget:
        # ----------------------- fused single-pass path ---------------------
        nb = max(1, min(N, block_budget // slab))
        if N >= 2:
            nb = min(nb, N // 2)              # >=2 grid steps for v7x megacore
        while N % nb:
            nb -= 1
        grid = (N // nb,)

        out, gates = pl.pallas_call(
            _se_fused_kernel,
            out_shape=(
                jax.ShapeDtypeStruct((N, C, HW), x.dtype),
                jax.ShapeDtypeStruct((N, 1, C2), jnp.float32),
            ),
            grid_spec=pltpu.PrefetchScalarGridSpec(
                num_scalar_prefetch=0,
                grid=grid,
                in_specs=[
                    pl.BlockSpec((nb, C, HW), lambda i: (i, 0, 0)),   # x
                    pl.BlockSpec((C, Cmid), lambda i: (0, 0)),        # fc1 W^T
                    pl.BlockSpec((1, Cmid), lambda i: (0, 0)),        # fc1 bias
                    pl.BlockSpec((Cmid, C2), lambda i: (0, 0)),       # fc2 W^T fused
                    pl.BlockSpec((1, C2), lambda i: (0, 0)),          # fc2 bias fused
                ],
                out_specs=[
                    pl.BlockSpec((nb, C, HW), lambda i: (i, 0, 0)),   # x * mean gate
                    pl.BlockSpec((nb, 1, C2), lambda i: (i, 0, 0)),   # gates slab
                ],
            ),
            input_output_aliases={0: 0},      # in-place: x buffer is donated
            compiler_params=pltpu.CompilerParams(
                dimension_semantics=("parallel",),
                vmem_limit_bytes=vmem_limit,
            ),
        )(x, w1_t, b1_row, w2_fused_t, b2_fused)
    else:
        # --------------- tiled two-pass path (production C*HW) --------------
        thw, hw_pad = _plan_hw_tile(C, HW, itemsize, block_budget)
        if hw_pad != HW:
            x = jnp.pad(x, ((0, 0), (0, 0), (0, hw_pad - HW)))
        n_hw = hw_pad // thw

        # Pass 1: per-channel sums over HW tiles, FC + sigmoid on the last tile.
        gates = pl.pallas_call(
            functools.partial(_se_gate_kernel, inv_hw=1.0 / HW),
            out_shape=jax.ShapeDtypeStruct((N, 1, C2), jnp.float32),
            grid_spec=pltpu.PrefetchScalarGridSpec(
                num_scalar_prefetch=0,
                grid=(N, n_hw),
                in_specs=[
                    pl.BlockSpec((1, C, thw), lambda b, t: (b, 0, t)),
                    pl.BlockSpec((C, Cmid), lambda b, t: (0, 0)),
                    pl.BlockSpec((1, Cmid), lambda b, t: (0, 0)),
                    pl.BlockSpec((Cmid, C2), lambda b, t: (0, 0)),
                    pl.BlockSpec((1, C2), lambda b, t: (0, 0)),
                ],
                out_specs=pl.BlockSpec((1, 1, C2), lambda b, t: (b, 0, 0)),
                scratch_shapes=[pltpu.VMEM((1, C), jnp.float32)],
            ),
            compiler_params=pltpu.CompilerParams(
                dimension_semantics=("parallel", "arbitrary"),
                vmem_limit_bytes=vmem_limit,
            ),
        )(x, w1_t, b1_row, w2_fused_t, b2_fused)

        gate_col = gates[:, 0, :C].reshape(N, C, 1)   # tiny (N, C, 1) relayout

        # Pass 2: rescale, fully parallel over (batch, HW tiles), in place.
        out = pl.pallas_call(
            _se_rescale_kernel,
            out_shape=jax.ShapeDtypeStruct((N, C, hw_pad), x.dtype),
            grid_spec=pltpu.PrefetchScalarGridSpec(
                num_scalar_prefetch=0,
                grid=(N, n_hw),
                in_specs=[
                    pl.BlockSpec((1, C, thw), lambda b, t: (b, 0, t)),
                    pl.BlockSpec((1, C, 1), lambda b, t: (b, 0, 0)),
                ],
                out_specs=pl.BlockSpec((1, C, thw), lambda b, t: (b, 0, t)),
            ),
            input_output_aliases={0: 0},
            compiler_params=pltpu.CompilerParams(
                dimension_semantics=("parallel", "parallel"),
                vmem_limit_bytes=vmem_limit,
            ),
        )(x, gate_col)
        out = out[:, :, :HW]

    mean = gates[:, 0, :C].reshape(N, C, 1, 1)
    std = gates[:, 0, C:].reshape(N, C, 1, 1)
    return out.reshape(N, C, H, W), (mean, std)


# -----------------------------------------------------------------------------
# Pure-JAX reference of the eval-mode PyTorch forward.
# -----------------------------------------------------------------------------
def ref_forward(x, w1, b1, w2, b2):
    m = x.mean(axis=(2, 3), keepdims=True)                     # (N, C, 1, 1)
    h = jnp.einsum('oc,ncij->noij', w1, m) + b1[None, :, None, None]
    h = jnp.maximum(h, 0.0)
    s = jnp.einsum('oc,ncij->noij', w2, h) + b2[None, :, None, None]
    s = jax.nn.sigmoid(s)
    mean = s[:, ::2]
    std = s[:, 1::2]
    return x * mean, mean, std


if __name__ == "__main__":
    # SEModule(channels=64, reduction_=10) -> reduction = 1 (gt list unused in eval)
    N, C, H, W = 2, 64, 16, 16
    Cmid = C // 1             # reduction = 1
    Cout = C * 2              # fc2 output channels

    key = jax.random.PRNGKey(0)
    k_x, k_w1, k_b1, k_w2, k_b2 = jax.random.split(key, 5)

    x = jax.random.normal(k_x, (N, C, H, W), dtype=jnp.float32)
    w1 = jax.random.normal(k_w1, (Cmid, C), dtype=jnp.float32) * (1.0 / jnp.sqrt(C))
    b1 = jax.random.normal(k_b1, (Cmid,), dtype=jnp.float32) * 0.1
    w2 = jax.random.normal(k_w2, (Cout, Cmid), dtype=jnp.float32) * (1.0 / jnp.sqrt(Cmid))
    b2 = jax.random.normal(k_b2, (Cout,), dtype=jnp.float32) * 0.1

    # Reference computed BEFORE any donated kernel call.
    ref_out, ref_mean, ref_std = ref_forward(x, w1, b1, w2, b2)
    jax.block_until_ready((ref_out, ref_mean, ref_std))

    params = prepare_se_params(w1, b1, w2, b2)

    # Fused single-pass path (donates its own fresh copy of x; x stays valid).
    out, (mean, std) = se_module_forward(x + 0.0, *params)
    jax.block_until_ready((out, mean, std))
    assert jnp.allclose(out, ref_out, atol=1e-4, rtol=1e-4)
    assert jnp.allclose(mean, ref_mean, atol=1e-5, rtol=1e-5)
    assert jnp.allclose(std, ref_std, atol=1e-5, rtol=1e-5)

    # Tiled two-pass fallback (forced via a tiny block budget) -- same results.
    out2, (mean2, std2) = se_module_forward(x + 0.0, *params,
                                            block_budget_bytes=32 * 1024)
    jax.block_until_ready((out2, mean2, std2))
    assert jnp.allclose(out2, ref_out, atol=1e-4, rtol=1e-4)
    assert jnp.allclose(mean2, ref_mean, atol=1e-5, rtol=1e-5)
    assert jnp.allclose(std2, ref_std, atol=1e-5, rtol=1e-5)

    assert out.shape == (N, C, H, W)
    assert mean.shape == (N, C, 1, 1) and std.shape == (N, C, 1, 1)

    print("KERNEL_OK")
</pallas_src>

<mosaic_0001>
module attributes {stable_mosaic.version = 11 : i64} {
  func.func @_se_fused_kernel(%arg0: i32, %arg1: memref<1x64x256xf32, #tpu.memory_space<vmem>>, %arg2: memref<64x64xf32, #tpu.memory_space<vmem>>, %arg3: memref<1x64xf32, #tpu.memory_space<vmem>>, %arg4: memref<64x128xf32, #tpu.memory_space<vmem>>, %arg5: memref<1x128xf32, #tpu.memory_space<vmem>>, %arg6: memref<1x64x256xf32, #tpu.memory_space<vmem>>, %arg7: memref<1x1x128xf32, #tpu.memory_space<vmem>>) attributes {dimension_semantics = [#tpu.dimension_semantics<parallel>], iteration_bounds = array<i64: 2>, scalar_prefetch = 0 : i64, scratch_operands = 0 : i64, tpu.core_type = #tpu.core_type<tc>, window_params = [{transform_indices = @transform_0, window_bounds = array<i64: 1, 64, 256>}, {pipeline_mode = #tpu.pipeline_mode<synchronous>, transform_indices = @transform_1, window_bounds = array<i64: 64, 64>}, {pipeline_mode = #tpu.pipeline_mode<synchronous>, transform_indices = @transform_2, window_bounds = array<i64: 1, 64>}, {pipeline_mode = #tpu.pipeline_mode<synchronous>, transform_indices = @transform_3, window_bounds = array<i64: 64, 128>}, {pipeline_mode = #tpu.pipeline_mode<synchronous>, transform_indices = @transform_4, window_bounds = array<i64: 1, 128>}, {transform_indices = @transform_5, window_bounds = array<i64: 1, 64, 256>}, {transform_indices = @transform_6, window_bounds = array<i64: 1, 1, 128>}]} {
    %c0 = arith.constant 0 : index
    %c0_0 = arith.constant 0 : index
    %c0_1 = arith.constant 0 : index
    %0 = vector.load %arg1[%c0, %c0_0, %c0_1] : memref<1x64x256xf32, #tpu.memory_space<vmem>>, vector<1x64x256xf32>
    %cst = arith.constant dense<0.000000e+00> : vector<1x64xf32>
    %1 = vector.multi_reduction <add>, %0, %cst [2] : vector<1x64x256xf32> to vector<1x64xf32>
    %cst_2 = arith.constant 2.560000e+02 : f32
    %2 = vector.broadcast %cst_2 : f32 to vector<1x64xf32>
    %3 = arith.divf %1, %2 : vector<1x64xf32>
    %c0_3 = arith.constant 0 : index
    %c0_4 = arith.constant 0 : index
    %4 = vector.load %arg2[%c0_3, %c0_4] : memref<64x64xf32, #tpu.memory_space<vmem>>, vector<64x64xf32>
    %cst_5 = arith.constant dense<0.000000e+00> : vector<1x64xf32>
    %5 = tpu.matmul %3, %4, %cst_5 {dimension_numbers = #tpu.dot_dimension_numbers<[1], [0], [0], [1], [0, 0, 1, 1], [], []>} : vector<1x64xf32>, vector<64x64xf32>, vector<1x64xf32> -> vector<1x64xf32>
    %c0_6 = arith.constant 0 : index
    %c0_7 = arith.constant 0 : index
    %6 = vector.load %arg3[%c0_6, %c0_7] : memref<1x64xf32, #tpu.memory_space<vmem>>, vector<1x64xf32>
    %7 = arith.addf %5, %6 : vector<1x64xf32>
    %cst_8 = arith.constant 0.000000e+00 : f32
    %8 = vector.broadcast %cst_8 : f32 to vector<1x64xf32>
    %9 = arith.maximumf %7, %8 : vector<1x64xf32>
    %c0_9 = arith.constant 0 : index
    %c0_10 = arith.constant 0 : index
    %10 = vector.load %arg4[%c0_9, %c0_10] : memref<64x128xf32, #tpu.memory_space<vmem>>, vector<64x128xf32>
    %cst_11 = arith.constant dense<0.000000e+00> : vector<1x128xf32>
    %11 = tpu.matmul %9, %10, %cst_11 {dimension_numbers = #tpu.dot_dimension_numbers<[1], [0], [0], [1], [0, 0, 1, 1], [], []>} : vector<1x64xf32>, vector<64x128xf32>, vector<1x128xf32> -> vector<1x128xf32>
    %c0_12 = arith.constant 0 : index
    %c0_13 = arith.constant 0 : index
    %12 = vector.load %arg5[%c0_12, %c0_13] : memref<1x128xf32, #tpu.memory_space<vmem>>, vector<1x128xf32>
    %13 = arith.addf %11, %12 : vector<1x128xf32>
    %14 = arith.negf %13 : vector<1x128xf32>
    %15 = math.exp %14 : vector<1x128xf32>
    %cst_14 = arith.constant 1.000000e+00 : f32
    %16 = vector.broadcast %cst_14 : f32 to vector<1x128xf32>
    %17 = arith.addf %16, %15 : vector<1x128xf32>
    %18 = arith.divf %16, %17 : vector<1x128xf32>
    %19 = vector.shape_cast %18 : vector<1x128xf32> to vector<1x1x128xf32>
    %c0_15 = arith.constant 0 : index
    %c0_16 = arith.constant 0 : index
    %c0_17 = arith.constant 0 : index
    %20 = vector.load %arg7[%c0_15, %c0_16, %c0_17] : memref<1x1x128xf32, #tpu.memory_space<vmem>>, vector<1x1x128xf32>
    tpu.vector_store %arg7[%c0_15, %c0_16, %c0_17], %19 {strides = array<i32>} : memref<1x1x128xf32, #tpu.memory_space<vmem>>, vector<1x1x128xf32>,
    %21 = vector.extract_strided_slice %18 {offsets = [0, 0], sizes = [1, 64], strides = [1, 1]} : vector<1x128xf32> to vector<1x64xf32>
    %22 = vector.shape_cast %21 : vector<1x64xf32> to vector<1x64x1xf32>
    %23 = vector.broadcast %22 : vector<1x64x1xf32> to vector<1x64x256xf32>
    %24 = arith.mulf %0, %23 : vector<1x64x256xf32>
    %c0_18 = arith.constant 0 : index
    %c0_19 = arith.constant 0 : index
    %c0_20 = arith.constant 0 : index
    %25 = vector.load %arg6[%c0_18, %c0_19, %c0_20] : memref<1x64x256xf32, #tpu.memory_space<vmem>>, vector<1x64x256xf32>
    tpu.vector_store %arg6[%c0_18, %c0_19, %c0_20], %24 {strides = array<i32>} : memref<1x64x256xf32, #tpu.memory_space<vmem>>, vector<1x64x256xf32>,
    return
  }
  func.func @transform_0(%arg0: i32) -> (i32, i32, i32) {
    %c0_i32 = arith.constant 0 : i32
    %c0_i32_0 = arith.constant 0 : i32
    %c0_i32_1 = arith.constant 0 : i32
    return %arg0, %c0_i32, %c0_i32_0 : i32, i32, i32
  }
  func.func @transform_1(%arg0: i32) -> (i32, i32) {
    %c0_i32 = arith.constant 0 : i32
    %c0_i32_0 = arith.constant 0 : i32
    %c0_i32_1 = arith.constant 0 : i32
    return %c0_i32, %c0_i32_0 : i32, i32
  }
  func.func @transform_2(%arg0: i32) -> (i32, i32) {
    %c0_i32 = arith.constant 0 : i32
    %c0_i32_0 = arith.constant 0 : i32
    %c0_i32_1 = arith.constant 0 : i32
    return %c0_i32, %c0_i32_0 : i32, i32
  }
  func.func @transform_3(%arg0: i32) -> (i32, i32) {
    %c0_i32 = arith.constant 0 : i32
    %c0_i32_0 = arith.constant 0 : i32
    %c0_i32_1 = arith.constant 0 : i32
    return %c0_i32, %c0_i32_0 : i32, i32
  }
  func.func @transform_4(%arg0: i32) -> (i32, i32) {
    %c0_i32 = arith.constant 0 : i32
    %c0_i32_0 = arith.constant 0 : i32
    %c0_i32_1 = arith.constant 0 : i32
    return %c0_i32, %c0_i32_0 : i32, i32
  }
  func.func @transform_5(%arg0: i32) -> (i32, i32, i32) {
    %c0_i32 = arith.constant 0 : i32
    %c0_i32_0 = arith.constant 0 : i32
    %c0_i32_1 = arith.constant 0 : i32
    return %arg0, %c0_i32, %c0_i32_0 : i32, i32, i32
  }
  func.func @transform_6(%arg0: i32) -> (i32, i32, i32) {
    %c0_i32 = arith.constant 0 : i32
    %c0_i32_0 = arith.constant 0 : i32
    %c0_i32_1 = arith.constant 0 : i32
    return %arg0, %c0_i32, %c0_i32_0 : i32, i32, i32
  }
}

</mosaic_0001>

<llo_original>
// kernel: se_module_forward.1
$region0: #{se_module_forward.1}
  #allocation0 [shape = 'u32[]', space=smem, size = 0x4, offset = 0x4, fixed_abs, tag = 'smem constant byte address 0x4 - core index']
  #allocation1 [shape = 'u32[144,128]{1,0:T(1,128)}', space=vmem, size = 0x12000, scoped, tag = 'internal scratch']
  %s0 = inlined_call_operand.vmem [shape: f32[2,64,256], index: 0, kind: input, shape index: {}, may-alias: {0,5}]
  %s1 = inlined_call_operand.vmem [shape: f32[64,64], index: 1, kind: input, shape index: {}]
  %s2 = inlined_call_operand.vmem [shape: f32[1,64], index: 2, kind: input, shape index: {}]
  %s3 = inlined_call_operand.vmem [shape: f32[64,128], index: 3, kind: input, shape index: {}]
  %s4 = inlined_call_operand.vmem [shape: f32[1,128], index: 4, kind: input, shape index: {}]
  %s5 = inlined_call_operand.vmem [shape: f32[2,64,256], index: 5, kind: output, shape index: {0}, may-alias: {0,5}]
  %s6 = inlined_call_operand.vmem [shape: f32[2,1,128], index: 6, kind: output, shape index: {1}]
  %7 = xla_tuple %s5, %s6
  %s8 = sld [smem:[#allocation0]]
  $region61: #{se_module_forward.1} parent=0
    _
  %s10 = ssub.s32 1, %s8
  %s11 = scalar_select 0, %s10, %s8
  loop: start=0, step=1, limit=4
  $region2: #{se_module_forward.1} parent=0 // loop_pre_header
    _
  $region3: #{se_module_forward.1} parent=0 // loop_header
    %s13 = sphi 0, %s17
    %p14 = scmp.ge.s32.totalorder %s13, 4
    %s23 = sphi 0, %s25
    %s26 = sphi 0, %s23
    %s27 = sphi 0, %s26
    %s43 = sphi 0, %s27
    %s47 = sphi 0, %s47
    %s49 = sphi 0, %s47
    %s50 = sphi 0, %s49
    %s64 = sphi 0, %s50
    %s68 = sphi 0, %s68
    %s70 = sphi 0, %s68
    %s71 = sphi 0, %s70
    %s85 = sphi 0, %s71
    %s89 = sphi 0, %s89
    %s91 = sphi 0, %s89
    %s92 = sphi 0, %s91
    %s106 = sphi 0, %s92
    %s110 = sphi 0, %s110
    %s112 = sphi 0, %s110
    %s113 = sphi 0, %s112
    %s127 = sphi 0, %s113
    %s133 = sphi 0, %s135
    %s136 = sphi 0, %s133
    %s137 = sphi 0, %s136
    %s153 = sphi 0, %s137
    %s159 = sphi 0, %s161
    %s162 = sphi 0, %s159
    %s163 = sphi 0, %s162
    %s179 = sphi 0, %s163
  $region4: #{se_module_forward.1} parent=0 // loop_header_branch
    %16 = sbr.rel (%p14) target = $region8
  $region5: #{se_module_forward.1} parent=0 // loop_body
    %s18 = ssub.s32 %s13, 1
    %s19 = ssub.s32 %s13, 2
    %s20 = sadd.s32 %s13, 1
    %s21 = ssub.s32 %s13, %s20
    %p22 = scmp.eq.s32.totalorder %s21, 0
    %s24 = sadd.s32 %s23, 1
    %s25 = scalar_select %p22, %s23, %s24
    %p28 = pneg %p22
    %p29 = scmp.eq.s32.totalorder %s13, 1
    %p30 = por %p28, %p29
    %p31 = scmp.ne.s32.totalorder %s23, %s26
    %p32 = scmp.eq.s32.totalorder %s13, 0
    %p33 = por %p31, %p32
    %p34 = scmp.ne.s32.totalorder %s23, %s26
    %p35 = scmp.eq.s32.totalorder %s18, 1
    %p36 = por %p34, %p35
    %p37 = scmp.ne.s32.totalorder %s26, %s27
    %p38 = scmp.eq.s32.totalorder %s18, 0
    %p39 = por %p37, %p38
    %p40 = scmp.ne.s32.totalorder %s26, %s27
    %p41 = scmp.eq.s32.totalorder %s19, 1
    %p42 = por %p40, %p41
    %p44 = scmp.ne.s32.totalorder %s27, %s43
    %p45 = scmp.eq.s32.totalorder %s19, 0
    %p46 = por %p44, %p45
    %s48 = sadd.s32 %s47, 1
    %p51 = scmp.eq.s32.totalorder %s13, 1
    %p52 = scmp.ne.s32.totalorder %s47, %s49
    %p53 = scmp.eq.s32.totalorder %s13, 0
    %p54 = por %p52, %p53
    %p55 = scmp.ne.s32.totalorder %s47, %s49
    %p56 = scmp.eq.s32.totalorder %s18, 1
    %p57 = por %p55, %p56
    %p58 = scmp.ne.s32.totalorder %s49, %s50
    %p59 = scmp.eq.s32.totalorder %s18, 0
    %p60 = por %p58, %p59
    %p61 = scmp.ne.s32.totalorder %s49, %s50
    %p62 = scmp.eq.s32.totalorder %s19, 1
    %p63 = por %p61, %p62
    %p65 = scmp.ne.s32.totalorder %s50, %s64
    %p66 = scmp.eq.s32.totalorder %s19, 0
    %p67 = por %p65, %p66
    %s69 = sadd.s32 %s68, 1
    %p72 = scmp.eq.s32.totalorder %s13, 1
    %p73 = scmp.ne.s32.totalorder %s68, %s70
    %p74 = scmp.eq.s32.totalorder %s13, 0
    %p75 = por %p73, %p74
    %p76 = scmp.ne.s32.totalorder %s68, %s70
    %p77 = scmp.eq.s32.totalorder %s18, 1
    %p78 = por %p76, %p77
    %p79 = scmp.ne.s32.totalorder %s70, %s71
    %p80 = scmp.eq.s32.totalorder %s18, 0
    %p81 = por %p79, %p80
    %p82 = scmp.ne.s32.totalorder %s70, %s71
    %p83 = scmp.eq.s32.totalorder %s19, 1
    %p84 = por %p82, %p83
    %p86 = scmp.ne.s32.totalorder %s71, %s85
    %p87 = scmp.eq.s32.totalorder %s19, 0
    %p88 = por %p86, %p87
    %s90 = sadd.s32 %s89, 1
    %p93 = scmp.eq.s32.totalorder %s13, 1
    %p94 = scmp.ne.s32.totalorder %s89, %s91
    %p95 = scmp.eq.s32.totalorder %s13, 0
    %p96 = por %p94, %p95
    %p97 = scmp.ne.s32.totalorder %s89, %s91
    %p98 = scmp.eq.s32.totalorder %s18, 1
    %p99 = por %p97, %p98
    %p100 = scmp.ne.s32.totalorder %s91, %s92
    %p101 = scmp.eq.s32.totalorder %s18, 0
    %p102 = por %p100, %p101
    %p103 = scmp.ne.s32.totalorder %s91, %s92
    %p104 = scmp.eq.s32.totalorder %s19, 1
    %p105 = por %p103, %p104
    %p107 = scmp.ne.s32.totalorder %s92, %s106
    %p108 = scmp.eq.s32.totalorder %s19, 0
    %p109 = por %p107, %p108
    %s111 = sadd.s32 %s110, 1
    %p114 = scmp.eq.s32.totalorder %s13, 1
    %p115 = scmp.ne.s32.totalorder %s110, %s112
    %p116 = scmp.eq.s32.totalorder %s13, 0
    %p117 = por %p115, %p116
    %p118 = scmp.ne.s32.totalorder %s110, %s112
    %p119 = scmp.eq.s32.totalorder %s18, 1
    %p120 = por %p118, %p119
    %p121 = scmp.ne.s32.totalorder %s112, %s113
    %p122 = scmp.eq.s32.totalorder %s18, 0
    %p123 = por %p121, %p122
    %p124 = scmp.ne.s32.totalorder %s112, %s113
    %p125 = scmp.eq.s32.totalorder %s19, 1
    %p126 = por %p124, %p125
    %p128 = scmp.ne.s32.totalorder %s113, %s127
    %p129 = scmp.eq.s32.totalorder %s19, 0
    %p130 = por %p128, %p129
    %s131 = ssub.s32 %s13, %s20
    %p132 = scmp.eq.s32.totalorder %s131, 0
    %s134 = sadd.s32 %s133, 1
    %s135 = scalar_select %p132, %s133, %s134
    %p138 = pneg %p132
    %p139 = scmp.eq.s32.totalorder %s13, 1
    %p140 = por %p138, %p139
    %p141 = scmp.ne.s32.totalorder %s133, %s136
    %p142 = scmp.eq.s32.totalorder %s13, 0
    %p143 = por %p141, %p142
    %p144 = scmp.ne.s32.totalorder %s133, %s136
    %p145 = scmp.eq.s32.totalorder %s18, 1
    %p146 = por %p144, %p145
    %p147 = scmp.ne.s32.totalorder %s136, %s137
    %p148 = scmp.eq.s32.totalorder %s18, 0
    %p149 = por %p147, %p148
    %p150 = scmp.ne.s32.totalorder %s136, %s137
    %p151 = scmp.eq.s32.totalorder %s19, 1
    %p152 = por %p150, %p151
    %p154 = scmp.ne.s32.totalorder %s137, %s153
    %p155 = scmp.eq.s32.totalorder %s19, 0
    %p156 = por %p154, %p155
    %s157 = ssub.s32 %s13, %s20
    %p158 = scmp.eq.s32.totalorder %s157, 0
    %s160 = sadd.s32 %s159, 1
    %s161 = scalar_select %p158, %s159, %s160
    %p164 = pneg %p158
    %p165 = scmp.eq.s32.totalorder %s13, 1
    %p166 = por %p164, %p165
    %p167 = scmp.ne.s32.totalorder %s159, %s162
    %p168 = scmp.eq.s32.totalorder %s13, 0
    %p169 = por %p167, %p168
    %p170 = scmp.ne.s32.totalorder %s159, %s162
    %p171 = scmp.eq.s32.totalorder %s18, 1
    %p172 = por %p170, %p171
    %p173 = scmp.ne.s32.totalorder %s162, %s163
    %p174 = scmp.eq.s32.totalorder %s18, 0
    %p175 = por %p173, %p174
    %p176 = scmp.ne.s32.totalorder %s162, %s163
    %p177 = scmp.eq.s32.totalorder %s19, 1
    %p178 = por %p176, %p177
    %p180 = scmp.ne.s32.totalorder %s163, %s179
    %p181 = scmp.eq.s32.totalorder %s19, 0
    %p182 = por %p180, %p181
    %p183 = scmp.le.s32.totalorder 1, %s13
    %p184 = scmp.lt.s32.totalorder %s13, 3
    %p185 = pnand %p183, %p184
    %p186 = pneg %p185
    // Predicated region
    $region9: #{se_module_forward.1} parent=5 // pred_check
      _
    $region10: #{se_module_forward.1} parent=5 // pred_check_branch
      %188 = sbr.rel (%p185) target = $region12
    $region11: #{se_module_forward.1} parent=5 // pred_region
      %s189 = ssub.s32 %s13, 1
      // Predicated region
      $region13: #{se_module_forward.1} parent=11 // pred_check
        %p190 = pneg %p60
      $region14: #{se_module_forward.1} parent=11 // pred_check_branch
        %192 = sbr.rel (%p190) target = $region16
      $region15: #{se_module_forward.1} parent=11 // pred_region
        _
      $region16: #{se_module_forward.1} parent=11 // pred_fallthru
        _
      // Predicated region
      $region17: #{se_module_forward.1} parent=11 // pred_check
        %p193 = pneg %p81
      $region18: #{se_module_forward.1} parent=11 // pred_check_branch
        %195 = sbr.rel (%p193) target = $region20
      $region19: #{se_module_forward.1} parent=11 // pred_region
        _
      $region20: #{se_module_forward.1} parent=11 // pred_fallthru
        _
      // Predicated region
      $region21: #{se_module_forward.1} parent=11 // pred_check
        %p196 = pneg %p102
      $region22: #{se_module_forward.1} parent=11 // pred_check_branch
        %198 = sbr.rel (%p196) target = $region24
      $region23: #{se_module_forward.1} parent=11 // pred_region
        _
      $region24: #{se_module_forward.1} parent=11 // pred_fallthru
        _
      // Predicated region
      $region25: #{se_module_forward.1} parent=11 // pred_check
        %p199 = pneg %p123
      $region26: #{se_module_forward.1} parent=11 // pred_check_branch
        %201 = sbr.rel (%p199) target = $region28
      $region27: #{se_module_forward.1} parent=11 // pred_region
        _
      $region28: #{se_module_forward.1} parent=11 // pred_fallthru
        _
    $region12: #{se_module_forward.1} parent=5 // pred_fallthru
      _
    %p202 = scmp.lt.s32.totalorder %s13, 2
    // Predicated region
    $region29: #{se_module_forward.1} parent=5 // pred_check
      %p203 = pneg %p202
    $region30: #{se_module_forward.1} parent=5 // pred_check_branch
      %205 = sbr.rel (%p203) target = $region32
    $region31: #{se_module_forward.1} parent=5 // pred_region
      // Predicated region
      $region33: #{se_module_forward.1} parent=31 // pred_check
        %p206 = pneg %p33
      $region34: #{se_module_forward.1} parent=31 // pred_check_branch
        %208 = sbr.rel (%p206) target = $region36
      $region35: #{se_module_forward.1} parent=31 // pred_region
        %p209 = scmp.lt.s32.totalorder %s13, 1
        %s210 = scalar_select %p209, %s13, 1
        %s211 = smul.addr %s210, 16
        %s212 = smul.addr %s211, 8
        %s213 = scalar_lea.vmem %s0, %s212
      $region36: #{se_module_forward.1} parent=31 // pred_fallthru
        _
    $region32: #{se_module_forward.1} parent=5 // pred_fallthru
      _
    %p214 = scmp.le.s32.totalorder 1, %s13
    %p215 = scmp.lt.s32.totalorder %s13, 3
    %p216 = pnand %p214, %p215
    %p217 = pneg %p216
    // Predicated region
    $region37: #{se_module_forward.1} parent=5 // pred_check
      _
    $region38: #{se_module_forward.1} parent=5 // pred_check_branch
      %219 = sbr.rel (%p216) target = $region40
    $region39: #{se_module_forward.1} parent=5 // pred_region
      %s220 = ssub.s32 %s13, 1
      %p221 = scmp.lt.s32.totalorder %s18, 1
      %s222 = scalar_select %p221, %s18, 1
      %s223 = smul.addr %s222, 16
      %s224 = smul.addr %s223, 8
      %s225 = scalar_lea.vmem %s0, %s224
      %p226 = pneg %p39
      %p227 = pneg %p36
      %p228 = pneg %p60
      %p229 = pneg %p57
      %p230 = pneg %p81
      %p231 = pneg %p78
      %p232 = pneg %p102
      %p233 = pneg %p99
      %p234 = pneg %p123
      %p235 = pneg %p120
      %p236 = pneg %p149
      %p237 = pneg %p146
      %p238 = scmp.lt.s32.totalorder %s18, 1
      %s239 = scalar_select %p238, %s18, 1
      %s240 = smul.addr %s239, 16
      %s241 = smul.addr %s240, 8
      %s242 = scalar_lea.vmem %s5, %s241
      %p243 = pneg %p175
      %p244 = pneg %p172
      %p245 = scmp.lt.s32.totalorder %s18, 1
      %s246 = scalar_select %p245, %s18, 1
      %s247 = scalar_lea.vmem %s6, %s246
      %p248 = scmp.lt.s32.totalorder %s18, 1
      %s249 = scalar_select %p248, %s18, 1
      %s250 = smul.addr %s249, 16
      %s251 = smul.addr %s250, 8
      %s252 = scalar_lea.vmem %s0, %s251
      %p253 = scmp.lt.s32.totalorder %s18, 1
      %s254 = scalar_select %p253, %s18, 1
      %s255 = smul.addr %s254, 16
      %s256 = smul.addr %s255, 8
      %s257 = scalar_lea.vmem %s5, %s256
      %p258 = scmp.lt.s32.totalorder %s18, 1
      %s259 = scalar_select %p258, %s18, 1
      %s260 = scalar_lea.vmem %s6, %s259
      %v261 = vld [vmem:[%s252] sm:$0xff]
      %v262 = vld [vmem:[%s252 + $0x8] sm:$0xff]
      %v263 = vld [vmem:[%s252 + $0x10] sm:$0xff]
      %v264 = vld [vmem:[%s252 + $0x18] sm:$0xff]
      %v265 = vld [vmem:[%s252 + $0x20] sm:$0xff]
      %v266 = vld [vmem:[%s252 + $0x28] sm:$0xff]
      %v267 = vld [vmem:[%s252 + $0x30] sm:$0xff]
      %v268 = vld [vmem:[%s252 + $0x38] sm:$0xff]
      %v269 = vld [vmem:[%s252 + $0x40] sm:$0xff]
      %v270 = vld [vmem:[%s252 + $0x48] sm:$0xff]
      %v271 = vld [vmem:[%s252 + $0x50] sm:$0xff]
      %v272 = vld [vmem:[%s252 + $0x58] sm:$0xff]
      %v273 = vld [vmem:[%s252 + $0x60] sm:$0xff]
      %v274 = vld [vmem:[%s252 + $0x68] sm:$0xff]
      %v275 = vld [vmem:[%s252 + $0x70] sm:$0xff]
      %v276 = vld [vmem:[%s252 + $0x78] sm:$0xff]
      %v277 = vadd.f32 %v261, %v262
      %278 = vadd.xlane.f32.xlu0 %v277
      %v279 = vpop.xlane.xlu0 %278
      %v280 = vadd.f32 %v263, %v264
      %281 = vadd.xlane.f32.xlu0 %v280
      %v282 = vpop.xlane.xlu0 %281
      %v283 = vadd.f32 %v265, %v266
      %284 = vadd.xlane.f32.xlu0 %v283
      %v285 = vpop.xlane.xlu0 %284
      %v286 = vadd.f32 %v267, %v268
      %287 = vadd.xlane.f32.xlu0 %v286
      %v288 = vpop.xlane.xlu0 %287
      %v289 = vadd.f32 %v269, %v270
      %290 = vadd.xlane.f32.xlu0 %v289
      %v291 = vpop.xlane.xlu0 %290
      %v292 = vadd.f32 %v271, %v272
      %293 = vadd.xlane.f32.xlu0 %v292
      %v294 = vpop.xlane.xlu0 %293
      %v295 = vadd.f32 %v273, %v274
      %296 = vadd.xlane.f32.xlu0 %v295
      %v297 = vpop.xlane.xlu0 %296
      %v298 = vadd.f32 %v275, %v276
      %299 = vadd.xlane.f32.xlu0 %v298
      %v300 = vpop.xlane.xlu0 %299
      %v301 = vrcp.pop 256.0
      %v302 = vmul.f32 %v279, %v301
      %v303 = vmul.f32 %v282, %v301
      %v304 = vmul.f32 %v285, %v301
      %v305 = vmul.f32 %v288, %v301
      %v306 = vmul.f32 %v291, %v301
      %v307 = vmul.f32 %v294, %v301
      %v308 = vmul.f32 %v297, %v301
      %v309 = vmul.f32 %v300, %v301
      %v310 = vld [vmem:[%s1] sm:$0xff]
      %v311 = vld [vmem:[%s1 + $0x8] sm:$0xff]
      %v312 = vld [vmem:[%s1 + $0x10] sm:$0xff]
      %v313 = vld [vmem:[%s1 + $0x18] sm:$0xff]
      %v314 = vld [vmem:[%s1 + $0x20] sm:$0xff]
      %v315 = vld [vmem:[%s1 + $0x28] sm:$0xff]
      %v316 = vld [vmem:[%s1 + $0x30] sm:$0xff]
      %v317 = vld [vmem:[%s1 + $0x38] sm:$0xff]
      %v318 = vld [vmem:[%s2] sm:$0x1]
      %v327 = vlaneseq
      %v328 = vand.u32 %v327, 127
      %v329 = vlaneseq
      %v330 = vshrl.u32 %v329, 7
      %v331 = vsub.s32 %v328, %v330
      %v332 = vrot.slane %v302, %v331
      %v333 = vadd.s32 %v328, 4294967288
      %v334 = vlaneseq
      %v335 = vshrl.u32 %v334, 7
      %v336 = vsub.s32 %v333, %v335
      %v337 = vrot.slane %v303, %v336
      %vm338 = vcmask 130112
      %v339 = vsel %vm338, %v337, %v332
      %v340 = vadd.s32 %v328, 4294967280
      %v341 = vlaneseq
      %v342 = vshrl.u32 %v341, 7
      %v343 = vsub.s32 %v340, %v342
      %v344 = vrot.slane %v304, %v343
      %vm345 = vcmask 195712
      %v346 = vsel %vm345, %v344, %v339
      %v347 = vadd.s32 %v328, 4294967272
      %v348 = vlaneseq
      %v349 = vshrl.u32 %v348, 7
      %v350 = vsub.s32 %v347, %v349
      %v351 = vrot.slane %v305, %v350
      %vm352 = vcmask 261312
      %v353 = vsel %vm352, %v351, %v346
      %v354 = vadd.s32 %v328, 4294967264
      %v355 = vlaneseq
      %v356 = vshrl.u32 %v355, 7
      %v357 = vsub.s32 %v354, %v356
      %v358 = vrot.slane %v306, %v357
      %vm359 = vcmask 326912
      %v360 = vsel %vm359, %v358, %v353
      %v361 = vadd.s32 %v328, 4294967256
      %v362 = vlaneseq
      %v363 = vshrl.u32 %v362, 7
      %v364 = vsub.s32 %v361, %v363
      %v365 = vrot.slane %v307, %v364
      %vm366 = vcmask 392512
      %v367 = vsel %vm366, %v365, %v360
      %v368 = vadd.s32 %v328, 4294967248
      %v369 = vlaneseq
      %v370 = vshrl.u32 %v369, 7
      %v371 = vsub.s32 %v368, %v370
      %v372 = vrot.slane %v308, %v371
      %vm373 = vcmask 458112
      %v374 = vsel %vm373, %v372, %v367
      %v375 = vadd.s32 %v328, 4294967240
      %v376 = vlaneseq
      %v377 = vshrl.u32 %v376, 7
      %v378 = vsub.s32 %v375, %v377
      %v379 = vrot.slane %v309, %v378
      %vm380 = vcmask 523712
      %v381 = vsel %vm380, %v379, %v374
      %vm382 = vcmask 523264
      %v383 = vsel %vm382, %v381, 0
      %385 = vmatprep.subr.mxu0 0.0
      %386 = vmatpush1.msra.mxu0 0.0
      %387 = vmatprep.subr.mxu0 0.0
      %388 = vmatpush1.msra.mxu0 0.0
      %389 = vmatprep.subr.mxu0 0.0
      %390 = vmatpush1.msra.mxu0 0.0
      %391 = vmatprep.subr.mxu0 0.0
      %392 = vmatpush1.msra.mxu0 0.0
      %393 = vmatprep.subr.mxu0 0.0
      %394 = vmatpush1.msra.mxu0 0.0
      %395 = vmatprep.subr.mxu0 0.0
      %396 = vmatpush1.msra.mxu0 0.0
      %397 = vmatprep.subr.mxu0 0.0
      %398 = vmatpush1.msra.mxu0 0.0
      %399 = vmatprep.subr.mxu0 0.0
      %400 = vmatpush1.msra.mxu0 0.0
      %401 = vmatprep.subr.mxu0 0.0
      %402 = vmatpush1.msra.mxu0 %v317
      %403 = vmatprep.subr.mxu0 0.0
      %404 = vmatpush1.msra.mxu0 %v316
      %405 = vmatprep.subr.mxu0 0.0
      %406 = vmatpush1.msra.mxu0 %v315
      %407 = vmatprep.subr.mxu0 0.0
      %408 = vmatpush1.msra.mxu0 %v314
      %409 = vmatprep.subr.mxu0 0.0
      %410 = vmatpush1.msra.mxu0 %v313
      %411 = vmatprep.subr.mxu0 0.0
      %412 = vmatpush1.msra.mxu0 %v312
      %413 = vmatprep.subr.mxu0 0.0
      %414 = vmatpush1.msra.mxu0 %v311
      %415 = vmatprep.subr.mxu0 0.0
      %416 = vmatpush1.msra.mxu0 %v310
      %417 = vmatprep.subr.mxu0 0.0
      %418 = vmatpush2.msra.mxu0 0.0
      %419 = vmatprep.subr.mxu0 0.0
      %420 = vmatpush2.msra.mxu0 0.0
      %421 = vmatprep.subr.mxu0 0.0
      %422 = vmatpush2.msra.mxu0 0.0
      %423 = vmatprep.subr.mxu0 0.0
      %424 = vmatpush2.msra.mxu0 0.0
      %425 = vmatprep.subr.mxu0 0.0
      %426 = vmatpush2.msra.mxu0 0.0
      %427 = vmatprep.subr.mxu0 0.0
      %428 = vmatpush2.msra.mxu0 0.0
      %429 = vmatprep.subr.mxu0 0.0
      %430 = vmatpush2.msra.mxu0 0.0
      %431 = vmatprep.subr.mxu0 0.0
      %432 = vmatpush2.msra.mxu0 0.0
      %433 = vmatprep.subr.mxu0 0.0
      %434 = vmatpush2.msra.mxu0 0.0
      %435 = vmatprep.subr.mxu0 0.0
      %436 = vmatpush2.msra.mxu0 0.0
      %437 = vmatprep.subr.mxu0 0.0
      %438 = vmatpush2.msra.mxu0 0.0
      %439 = vmatprep.subr.mxu0 0.0
      %440 = vmatpush2.msra.mxu0 0.0
      %441 = vmatprep.subr.mxu0 0.0
      %442 = vmatpush2.msra.mxu0 0.0
      %443 = vmatprep.subr.mxu0 0.0
      %444 = vmatpush2.msra.mxu0 0.0
      %445 = vmatprep.subr.mxu0 0.0
      %446 = vmatpush2.msra.mxu0 0.0
      %447 = vmatprep.subr.mxu0 0.0
      %448 = vmatpush2.msra.mxu0 0.0
      %449 = vmatprep.mubr.f32.mxu0 0.0
      %450 = vmatmul.mubr.f32.gmra.mxu0 %v383
      %v451 = vpop.f32.mrf.mxu0
      %v452 = vadd.f32 %v318, %v451
      %v453 = vpop.f32.mrf.mxu0
      %454 = vdwg.mxu0
      %v455 = vmax.f32 %v452, 0.0
      %v456 = vld [vmem:[%s3] sm:$0xff]
      %v457 = vld [vmem:[%s3 + $0x8] sm:$0xff]
      %v458 = vld [vmem:[%s3 + $0x10] sm:$0xff]
      %v459 = vld [vmem:[%s3 + $0x18] sm:$0xff]
      %v460 = vld [vmem:[%s3 + $0x20] sm:$0xff]
      %v461 = vld [vmem:[%s3 + $0x28] sm:$0xff]
      %v462 = vld [vmem:[%s3 + $0x30] sm:$0xff]
      %v463 = vld [vmem:[%s3 + $0x38] sm:$0xff]
      %v464 = vld [vmem:[%s4] sm:$0x1]
      %v466 = vsel %vm382, %v455, 0
      %468 = vmatprep.subr.mxu0 0.0
      %469 = vmatpush1.msra.mxu0 0.0
      %470 = vmatprep.subr.mxu0 0.0
      %471 = vmatpush1.msra.mxu0 0.0
      %472 = vmatprep.subr.mxu0 0.0
      %473 = vmatpush1.msra.mxu0 0.0
      %474 = vmatprep.subr.mxu0 0.0
      %475 = vmatpush1.msra.mxu0 0.0
      %476 = vmatprep.subr.mxu0 0.0
      %477 = vmatpush1.msra.mxu0 0.0
      %478 = vmatprep.subr.mxu0 0.0
      %479 = vmatpush1.msra.mxu0 0.0
      %480 = vmatprep.subr.mxu0 0.0
      %481 = vmatpush1.msra.mxu0 0.0
      %482 = vmatprep.subr.mxu0 0.0
      %483 = vmatpush1.msra.mxu0 0.0
      %484 = vmatprep.subr.mxu0 0.0
      %485 = vmatpush1.msra.mxu0 %v463
      %486 = vmatprep.subr.mxu0 0.0
      %487 = vmatpush1.msra.mxu0 %v462
      %488 = vmatprep.subr.mxu0 0.0
      %489 = vmatpush1.msra.mxu0 %v461
      %490 = vmatprep.subr.mxu0 0.0
      %491 = vmatpush1.msra.mxu0 %v460
      %492 = vmatprep.subr.mxu0 0.0
      %493 = vmatpush1.msra.mxu0 %v459
      %494 = vmatprep.subr.mxu0 0.0
      %495 = vmatpush1.msra.mxu0 %v458
      %496 = vmatprep.subr.mxu0 0.0
      %497 = vmatpush1.msra.mxu0 %v457
      %498 = vmatprep.subr.mxu0 0.0
      %499 = vmatpush1.msra.mxu0 %v456
      %500 = vmatprep.subr.mxu0 0.0
      %501 = vmatpush2.msra.mxu0 0.0
      %502 = vmatprep.subr.mxu0 0.0
      %503 = vmatpush2.msra.mxu0 0.0
      %504 = vmatprep.subr.mxu0 0.0
      %505 = vmatpush2.msra.mxu0 0.0
      %506 = vmatprep.subr.mxu0 0.0
      %507 = vmatpush2.msra.mxu0 0.0
      %508 = vmatprep.subr.mxu0 0.0
      %509 = vmatpush2.msra.mxu0 0.0
      %510 = vmatprep.subr.mxu0 0.0
      %511 = vmatpush2.msra.mxu0 0.0
      %512 = vmatprep.subr.mxu0 0.0
      %513 = vmatpush2.msra.mxu0 0.0
      %514 = vmatprep.subr.mxu0 0.0
      %515 = vmatpush2.msra.mxu0 0.0
      %516 = vmatprep.subr.mxu0 0.0
      %517 = vmatpush2.msra.mxu0 0.0
      %518 = vmatprep.subr.mxu0 0.0
      %519 = vmatpush2.msra.mxu0 0.0
      %520 = vmatprep.subr.mxu0 0.0
      %521 = vmatpush2.msra.mxu0 0.0
      %522 = vmatprep.subr.mxu0 0.0
      %523 = vmatpush2.msra.mxu0 0.0
      %524 = vmatprep.subr.mxu0 0.0
      %525 = vmatpush2.msra.mxu0 0.0
      %526 = vmatprep.subr.mxu0 0.0
      %527 = vmatpush2.msra.mxu0 0.0
      %528 = vmatprep.subr.mxu0 0.0
      %529 = vmatpush2.msra.mxu0 0.0
      %530 = vmatprep.subr.mxu0 0.0
      %531 = vmatpush2.msra.mxu0 0.0
      %532 = vmatprep.mubr.f32.mxu0 0.0
      %533 = vmatmul.mubr.f32.gmra.mxu0 %v466
      %v534 = vpop.f32.mrf.mxu0
      %v535 = vadd.f32 %v464, %v534
      %v536 = vpop.f32.mrf.mxu0
      %537 = vdwg.mxu0
      %v538 = vxor.u32 %v535, 2147483648
      %v539 = vmul.f32 %v538, 1.442695
      %v540 = vpow.pop %v539
      %v541 = vadd.f32 %v540, 1.0
      %v542 = vrcp.pop %v541
      %v543 = vmul.f32 1.0, %v542
      %544 = vst [vmem:[%s260] sm:$0x1] %v543
      %v545 = vlaneseq
      %v546 = vshrl.u32 %v545, 7
      %v547 = vsub.s32 0, %v546
      %v548 = vrot.slane %v543, %v547
      %550 = vbcast.lane.b32.xlu0 %v548, 256
      %v551 = vpop.permute.xlu0 %550
      %s553 = sor.u32 256, 8
      %554 = vbcast.lane.b32.xlu0 %v548, %s553
      %v555 = vpop.permute.xlu0 %554
      %s557 = sor.u32 256, 16
      %558 = vbcast.lane.b32.xlu0 %v548, %s557
      %v559 = vpop.permute.xlu0 %558
      %s561 = sor.u32 256, 24
      %562 = vbcast.lane.b32.xlu0 %v548, %s561
      %v563 = vpop.permute.xlu0 %562
      %s565 = sor.u32 256, 32
      %566 = vbcast.lane.b32.xlu0 %v548, %s565
      %v567 = vpop.permute.xlu0 %566
      %s569 = sor.u32 256, 40
      %570 = vbcast.lane.b32.xlu0 %v548, %s569
      %v571 = vpop.permute.xlu0 %570
      %s573 = sor.u32 256, 48
      %574 = vbcast.lane.b32.xlu0 %v548, %s573
      %v575 = vpop.permute.xlu0 %574
      %s577 = sor.u32 256, 56
      %578 = vbcast.lane.b32.xlu0 %v548, %s577
      %v579 = vpop.permute.xlu0 %578
      %v580 = vmul.f32 %v261, %v551
      %v581 = vmul.f32 %v262, %v551
      %v582 = vmul.f32 %v263, %v555
      %v583 = vmul.f32 %v264, %v555
      %v584 = vmul.f32 %v265, %v559
      %v585 = vmul.f32 %v266, %v559
      %v586 = vmul.f32 %v267, %v563
      %v587 = vmul.f32 %v268, %v563
      %v588 = vmul.f32 %v269, %v567
      %v589 = vmul.f32 %v270, %v567
      %v590 = vmul.f32 %v271, %v571
      %v591 = vmul.f32 %v272, %v571
      %v592 = vmul.f32 %v273, %v575
      %v593 = vmul.f32 %v274, %v575
      %v594 = vmul.f32 %v275, %v579
      %v595 = vmul.f32 %v276, %v579
      %596 = vst [vmem:[%s257] sm:$0xff] %v580
      %597 = vst [vmem:[%s257 + $0x8] sm:$0xff] %v581
      %598 = vst [vmem:[%s257 + $0x10] sm:$0xff] %v582
      %599 = vst [vmem:[%s257 + $0x18] sm:$0xff] %v583
      %600 = vst [vmem:[%s257 + $0x20] sm:$0xff] %v584
      %601 = vst [vmem:[%s257 + $0x28] sm:$0xff] %v585
      %602 = vst [vmem:[%s257 + $0x30] sm:$0xff] %v586
      %603 = vst [vmem:[%s257 + $0x38] sm:$0xff] %v587
      %604 = vst [vmem:[%s257 + $0x40] sm:$0xff] %v588
      %605 = vst [vmem:[%s257 + $0x48] sm:$0xff] %v589
      %606 = vst [vmem:[%s257 + $0x50] sm:$0xff] %v590
      %607 = vst [vmem:[%s257 + $0x58] sm:$0xff] %v591
      %608 = vst [vmem:[%s257 + $0x60] sm:$0xff] %v592
      %609 = vst [vmem:[%s257 + $0x68] sm:$0xff] %v593
      %610 = vst [vmem:[%s257 + $0x70] sm:$0xff] %v594
      %611 = vst [vmem:[%s257 + $0x78] sm:$0xff] %v595
      %p612 = scmp.lt.s32.totalorder %s18, 1
      %s613 = scalar_select %p612, %s18, 1
      %s614 = smul.addr %s613, 16
      %s615 = smul.addr %s614, 8
      %s616 = scalar_lea.vmem %s5, %s615
      %p617 = scmp.lt.s32.totalorder %s18, 1
      %s618 = scalar_select %p617, %s18, 1
      %s619 = scalar_lea.vmem %s6, %s618
      // Predicated region
      $region41: #{se_module_forward.1} parent=39 // pred_check
        %p620 = pneg %p146
      $region42: #{se_module_forward.1} parent=39 // pred_check_branch
        %622 = sbr.rel (%p620) target = $region44
      $region43: #{se_module_forward.1} parent=39 // pred_region
        _
      $region44: #{se_module_forward.1} parent=39 // pred_fallthru
        _
      // Predicated region
      $region45: #{se_module_forward.1} parent=39 // pred_check
        %p623 = pneg %p172
      $region46: #{se_module_forward.1} parent=39 // pred_check_branch
        %625 = sbr.rel (%p623) target = $region48
      $region47: #{se_module_forward.1} parent=39 // pred_region
        _
      $region48: #{se_module_forward.1} parent=39 // pred_fallthru
        _
    $region40: #{se_module_forward.1} parent=5 // pred_fallthru
      _
    %p626 = scmp.le.s32.totalorder 2, %s13
    // Predicated region
    $region49: #{se_module_forward.1} parent=5 // pred_check
      %p627 = pneg %p626
    $region50: #{se_module_forward.1} parent=5 // pred_check_branch
      %629 = sbr.rel (%p627) target = $region52
    $region51: #{se_module_forward.1} parent=5 // pred_region
      %s630 = ssub.s32 %s13, 2
      // Predicated region
      $region53: #{se_module_forward.1} parent=51 // pred_check
        %p631 = pneg %p152
      $region54: #{se_module_forward.1} parent=51 // pred_check_branch
        %633 = sbr.rel (%p631) target = $region56
      $region55: #{se_module_forward.1} parent=51 // pred_region
        %p634 = scmp.lt.s32.totalorder %s19, 1
        %s635 = scalar_select %p634, %s19, 1
        %s636 = smul.addr %s635, 16
        %s637 = smul.addr %s636, 8
        %s638 = scalar_lea.vmem %s5, %s637
      $region56: #{se_module_forward.1} parent=51 // pred_fallthru
        _
      // Predicated region
      $region57: #{se_module_forward.1} parent=51 // pred_check
        %p639 = pneg %p178
      $region58: #{se_module_forward.1} parent=51 // pred_check_branch
        %641 = sbr.rel (%p639) target = $region60
      $region59: #{se_module_forward.1} parent=51 // pred_region
        %p642 = scmp.lt.s32.totalorder %s19, 1
        %s643 = scalar_select %p642, %s19, 1
        %s644 = scalar_lea.vmem %s6, %s643
      $region60: #{se_module_forward.1} parent=51 // pred_fallthru
        _
    $region52: #{se_module_forward.1} parent=5 // pred_fallthru
      _
  $region6: #{se_module_forward.1} parent=0 // loop_footer
    %s17 = sadd.s32 1, %s13
  $region7: #{se_module_forward.1} parent=0 // loop_footer_branch
    %12 = sbr.rel target = $region3
  $region8: #{se_module_forward.1} parent=0 // loop_exit
    _

</llo_original>
